<compile_context>
chip_gen: v6e
topology: v6e:2x2x1
jax: 0.10.0
libtpu: 0.0.40
codegen_flags: <defaults>
</compile_context>

<pallas_src>
import functools

import jax
import jax.numpy as jnp
from jax.experimental import pallas as pl
from jax.experimental.pallas import tpu as pltpu


def _mlp_kernel(x_ref, w1_ref, b1_ref, w2_ref, b2_ref, w3_ref, b3_ref, o_ref,
                *, chunk):
    # x_ref : (4, TB)  f32       w1_ref: (122, 4) f32    b1_ref: (122, 1) f32
    # w2_ref: (38, 122) cdtype   b2_ref: (38, 1) f32
    # w3_ref: (1, 38)  cdtype    b3_ref: (1, 1) f32 scalar in SMEM
    # o_ref : (1, TB)  f32  (lane-dense output tile)
    w1 = w1_ref[...]
    b1 = b1_ref[...]
    w2 = w2_ref[...]
    b2 = b2_ref[...]
    w3 = w3_ref[...]
    b3 = b3_ref[0, 0]

    k_in = x_ref.shape[0]                      # 4 input features
    tb = x_ref.shape[1]
    n_chunks = tb // chunk                     # chunk always divides tb

    # Loop-invariant (122, 1) weight columns for the layer-1 VPU FMAs.
    w1_cols = [w1[:, k:k + 1] for k in range(k_in)]

    # Static (fully unrolled) chunk loop: static lane slices are free views,
    # the short fixed trip count stays visible to the LLO scheduler, and the
    # per-chunk intermediates keep VMEM use bounded regardless of TB.
    for c in range(n_chunks):
        lo, hi = c * chunk, (c + 1) * chunk
        x = x_ref[:, lo:hi]                                    # (4, chunk) f32

        # ---- Layer 1 on the VPU: h1 = relu(w1 @ x + b1) -------------------
        # K=4 means ~3% MXU MAC utilization; do 4 broadcast outer products on
        # the VALU slots instead (bias folded into the accumulator init).
        h1 = b1 + w1_cols[0] * x[0:1, :]
        for k in range(1, k_in):
            h1 = h1 + w1_cols[k] * x[k:k + 1, :]
        h1 = jnp.maximum(h1, 0.0).astype(w2.dtype)             # (122, chunk)

        # ---- Layer 2 on the MXU (bf16 operands, f32 accumulate) -----------
        h2 = jnp.dot(w2, h1, preferred_element_type=jnp.float32)
        h2 = jnp.maximum(h2 + b2, 0.0).astype(w3.dtype)        # (38, chunk)

        # ---- Layer 3 on the MXU --------------------------------------------
        # TODO(synk): if a bundle dump still shows the MXU slot binding, this
        # M=1 matmul could move to a VPU multiply + sublane reduction (review
        # item 10) -- only if VALU is not already the binding slot.
        out = jnp.dot(w3, h2, preferred_element_type=jnp.float32) + b3
        o_ref[:, lo:hi] = out.astype(o_ref.dtype)              # lane-dense vst


def prepare_params(params, compute_dtype=jnp.bfloat16):
    """One-time parameter prep (cast + layout). Do NOT call per forward.

    Accepts PyTorch-native shapes: w1 (122,4) b1 (122,), w2 (38,122) b2 (38,),
    w3 (1,38) b3 (1,).  MXU operands (w2, w3) are stored in `compute_dtype`
    (default bf16); everything the VPU touches stays f32.
    """
    f32 = jnp.float32
    return {
        "w1": jnp.asarray(params["w1"], f32),                  # VPU layer -> f32
        "b1": jnp.asarray(params["b1"], f32).reshape(-1, 1),
        "w2": jnp.asarray(params["w2"], compute_dtype),
        "b2": jnp.asarray(params["b2"], f32).reshape(-1, 1),
        "w3": jnp.asarray(params["w3"], compute_dtype),
        "b3": jnp.asarray(params["b3"], f32).reshape(1, 1),
    }


@functools.partial(jax.jit, static_argnames=("tb", "inner_chunk"))
def mlp_forward(x, params, *, tb=8192, inner_chunk=512):
    """Fused forward pass.  x: (B, 4); params: output of prepare_params().
    Returns (B, 1) float32."""
    B, F = x.shape
    d1, d_in = params["w1"].shape            # (122, 4)
    d2 = params["w2"].shape[0]               # 38
    d3 = params["w3"].shape[0]               # 1
    assert F == d_in == 4, "expected 4 input features"

    # ---- batch-tile selection ------------------------------------------------
    c128 = pl.cdiv(B, 128)                   # number of 128-lane column groups
    tb = max(128, min(int(tb), 16384))       # 16384 cap: v7x has only 64 MiB VMEM
    tb = (tb // 128) * 128
    if c128 >= 2:
        # Keep >=2 grid tiles so the "parallel" axis feeds both v7x TensorCores.
        tb = min(tb, 128 * pl.cdiv(c128, 2))
    else:
        tb = 128
    n_tiles = pl.cdiv(B, tb)
    # In-kernel chunking keeps intermediates small; fall back to one chunk.
    chunk = inner_chunk if (inner_chunk and tb % inner_chunk == 0) else tb

    # (features, batch): batch on the 128-wide lane axis -> the (1, TB) output
    # tile is lane-dense.  No jnp.pad: ragged tails are handled by the Pallas
    # partial-block clamp (OOB reads are garbage columns that never reach the
    # valid output; OOB writes are dropped).
    xT = x.astype(jnp.float32).T             # (4, B)

    kernel = functools.partial(_mlp_kernel, chunk=chunk)

    grid_spec = pltpu.PrefetchScalarGridSpec(
        num_scalar_prefetch=0,
        grid=(n_tiles,),
        in_specs=[
            # Batch-tiled input (features on sublanes, batch lane-dense).
            pl.BlockSpec((d_in, tb), lambda i: (0, i)),
            # Parameters: constant index_map -> VMEM-resident across grid steps.
            pl.BlockSpec((d1, d_in), lambda i: (0, 0)),
            pl.BlockSpec((d1, 1), lambda i: (0, 0)),
            pl.BlockSpec((d2, d1), lambda i: (0, 0)),
            pl.BlockSpec((d2, 1), lambda i: (0, 0)),
            pl.BlockSpec((d3, d2), lambda i: (0, 0)),
            # Single scalar bias lives in SMEM (no padded VMEM tile).
            pl.BlockSpec(memory_space=pltpu.MemorySpace.SMEM),
        ],
        out_specs=pl.BlockSpec((d3, tb), lambda i: (0, i)),
    )

    out = pl.pallas_call(
        kernel,
        out_shape=jax.ShapeDtypeStruct((d3, B), jnp.float32),
        grid_spec=grid_spec,
        compiler_params=pltpu.CompilerParams(
            dimension_semantics=("parallel",),
            # Headroom over v5e's 16 MiB scoped default; chunked intermediates
            # keep actual use far below this even at tb=16384 (safe on v7x too).
            vmem_limit_bytes=32 * 1024 * 1024,
        ),
    )(xT, params["w1"], params["b1"], params["w2"], params["b2"],
      params["w3"], params["b3"])

    # Back to the PyTorch (B, 1) layout (free relayout of a (1, B) row).
    return out.reshape(B, 1)


def init_params(key):
    """Deterministic init mimicking PyTorch nn.Linear defaults
    (uniform +/- 1/sqrt(fan_in)), PyTorch-native (out, in) / (out,) shapes."""
    dims = [(4, 122), (122, 38), (38, 1)]
    params = {}
    for i, (fan_in, fan_out) in enumerate(dims, start=1):
        key, kw, kb = jax.random.split(key, 3)
        bound = 1.0 / (fan_in ** 0.5)
        params[f"w{i}"] = jax.random.uniform(
            kw, (fan_out, fan_in), jnp.float32, minval=-bound, maxval=bound)
        params[f"b{i}"] = jax.random.uniform(
            kb, (fan_out,), jnp.float32, minval=-bound, maxval=bound)
    return params


def reference_forward(x, p):
    h1 = jnp.maximum(x @ p["w1"].T + p["b1"], 0.0)
    h2 = jnp.maximum(h1 @ p["w2"].T + p["b2"], 0.0)
    return h2 @ p["w3"].T + p["b3"]


if __name__ == "__main__":
    key = jax.random.PRNGKey(0)
    key, kx1, kx2 = jax.random.split(key, 3)
    params = init_params(key)

    # One-time parameter prep (review: don't re-cast ~20 KB of params per call).
    params_bf16 = prepare_params(params)                             # default path
    params_f32 = prepare_params(params, compute_dtype=jnp.float32)   # exact path

    # Small single-tile ragged batch (B=8 -> one partial 128-lane tile).
    x_small = jax.random.normal(kx1, (8, 4), jnp.float32)
    ref_small = reference_forward(x_small, params)
    out_small = jax.block_until_ready(mlp_forward(x_small, params_f32))
    assert out_small.shape == (8, 1)
    assert jnp.allclose(out_small, ref_small, atol=1e-5, rtol=1e-5)

    # Multi-tile ragged batch (B=300 -> tb=256, 2 grid tiles + partial tail).
    x_multi = jax.random.normal(kx2, (300, 4), jnp.float32)
    ref_multi = reference_forward(x_multi, params)

    out_multi_f32 = jax.block_until_ready(mlp_forward(x_multi, params_f32))
    assert out_multi_f32.shape == (300, 1)
    assert jnp.allclose(out_multi_f32, ref_multi, atol=1e-5, rtol=1e-5)

    # Default bf16 MXU-operand path: f32 accumulation, looser tolerance.
    out_multi_bf16 = jax.block_until_ready(mlp_forward(x_multi, params_bf16))
    assert out_multi_bf16.shape == (300, 1)
    assert jnp.allclose(out_multi_bf16, ref_multi, atol=5e-2, rtol=5e-2)

    print("KERNEL_OK")
</pallas_src>

<mosaic_0001>
module attributes {stable_mosaic.version = 11 : i64} {
  func.func @_mlp_kernel(%arg0: i32, %arg1: memref<4x128xf32, #tpu.memory_space<vmem>>, %arg2: memref<122x4xf32, #tpu.memory_space<vmem>>, %arg3: memref<122x1xf32, #tpu.memory_space<vmem>>, %arg4: memref<38x122xf32, #tpu.memory_space<vmem>>, %arg5: memref<38x1xf32, #tpu.memory_space<vmem>>, %arg6: memref<1x38xf32, #tpu.memory_space<vmem>>, %arg7: memref<1x1xf32, #tpu.memory_space<smem>>, %arg8: memref<1x128xf32, #tpu.memory_space<vmem>>) attributes {dimension_semantics = [#tpu.dimension_semantics<parallel>], iteration_bounds = array<i64: 1>, scalar_prefetch = 0 : i64, scratch_operands = 0 : i64, tpu.core_type = #tpu.core_type<tc>, window_params = [{transform_indices = @transform_0, window_bounds = array<i64: 4, 128>}, {pipeline_mode = #tpu.pipeline_mode<synchronous>, transform_indices = @transform_1, window_bounds = array<i64: 122, 4>}, {pipeline_mode = #tpu.pipeline_mode<synchronous>, transform_indices = @transform_2, window_bounds = array<i64: 122, 1>}, {pipeline_mode = #tpu.pipeline_mode<synchronous>, transform_indices = @transform_3, window_bounds = array<i64: 38, 122>}, {pipeline_mode = #tpu.pipeline_mode<synchronous>, transform_indices = @transform_4, window_bounds = array<i64: 38, 1>}, {pipeline_mode = #tpu.pipeline_mode<synchronous>, transform_indices = @transform_5, window_bounds = array<i64: 1, 38>}, {transform_indices = @transform_6, window_bounds = array<i64: 1, 1>}, {transform_indices = @transform_7, window_bounds = array<i64: 1, 128>}]} {
    %c0 = arith.constant 0 : index
    %c0_0 = arith.constant 0 : index
    %0 = vector.load %arg2[%c0, %c0_0] : memref<122x4xf32, #tpu.memory_space<vmem>>, vector<122x4xf32>
    %c0_1 = arith.constant 0 : index
    %c0_2 = arith.constant 0 : index
    %1 = vector.load %arg3[%c0_1, %c0_2] : memref<122x1xf32, #tpu.memory_space<vmem>>, vector<122x1xf32>
    %c0_3 = arith.constant 0 : index
    %c0_4 = arith.constant 0 : index
    %2 = vector.load %arg4[%c0_3, %c0_4] : memref<38x122xf32, #tpu.memory_space<vmem>>, vector<38x122xf32>
    %c0_5 = arith.constant 0 : index
    %c0_6 = arith.constant 0 : index
    %3 = vector.load %arg5[%c0_5, %c0_6] : memref<38x1xf32, #tpu.memory_space<vmem>>, vector<38x1xf32>
    %c0_7 = arith.constant 0 : index
    %c0_8 = arith.constant 0 : index
    %4 = vector.load %arg6[%c0_7, %c0_8] : memref<1x38xf32, #tpu.memory_space<vmem>>, vector<1x38xf32>
    %c0_9 = arith.constant 0 : index
    %c0_10 = arith.constant 0 : index
    %5 = memref.load %arg7[%c0_9, %c0_10] : memref<1x1xf32, #tpu.memory_space<smem>>
    %6 = vector.extract_strided_slice %0 {offsets = [0, 0], sizes = [122, 1], strides = [1, 1]} : vector<122x4xf32> to vector<122x1xf32>
    %7 = vector.extract_strided_slice %0 {offsets = [0, 1], sizes = [122, 1], strides = [1, 1]} : vector<122x4xf32> to vector<122x1xf32>
    %8 = vector.extract_strided_slice %0 {offsets = [0, 2], sizes = [122, 1], strides = [1, 1]} : vector<122x4xf32> to vector<122x1xf32>
    %9 = vector.extract_strided_slice %0 {offsets = [0, 3], sizes = [122, 1], strides = [1, 1]} : vector<122x4xf32> to vector<122x1xf32>
    %c0_11 = arith.constant 0 : index
    %c0_12 = arith.constant 0 : index
    %10 = vector.load %arg1[%c0_11, %c0_12] : memref<4x128xf32, #tpu.memory_space<vmem>>, vector<4x128xf32>
    %11 = vector.extract_strided_slice %10 {offsets = [0, 0], sizes = [1, 128], strides = [1, 1]} : vector<4x128xf32> to vector<1x128xf32>
    %12 = vector.broadcast %6 : vector<122x1xf32> to vector<122x128xf32>
    %13 = vector.broadcast %11 : vector<1x128xf32> to vector<122x128xf32>
    %14 = arith.mulf %12, %13 : vector<122x128xf32>
    %15 = vector.broadcast %1 : vector<122x1xf32> to vector<122x128xf32>
    %16 = arith.addf %15, %14 : vector<122x128xf32>
    %17 = vector.extract_strided_slice %10 {offsets = [1, 0], sizes = [1, 128], strides = [1, 1]} : vector<4x128xf32> to vector<1x128xf32>
    %18 = vector.broadcast %7 : vector<122x1xf32> to vector<122x128xf32>
    %19 = vector.broadcast %17 : vector<1x128xf32> to vector<122x128xf32>
    %20 = arith.mulf %18, %19 : vector<122x128xf32>
    %21 = arith.addf %16, %20 : vector<122x128xf32>
    %22 = vector.extract_strided_slice %10 {offsets = [2, 0], sizes = [1, 128], strides = [1, 1]} : vector<4x128xf32> to vector<1x128xf32>
    %23 = vector.broadcast %8 : vector<122x1xf32> to vector<122x128xf32>
    %24 = vector.broadcast %22 : vector<1x128xf32> to vector<122x128xf32>
    %25 = arith.mulf %23, %24 : vector<122x128xf32>
    %26 = arith.addf %21, %25 : vector<122x128xf32>
    %27 = vector.extract_strided_slice %10 {offsets = [3, 0], sizes = [1, 128], strides = [1, 1]} : vector<4x128xf32> to vector<1x128xf32>
    %28 = vector.broadcast %9 : vector<122x1xf32> to vector<122x128xf32>
    %29 = vector.broadcast %27 : vector<1x128xf32> to vector<122x128xf32>
    %30 = arith.mulf %28, %29 : vector<122x128xf32>
    %31 = arith.addf %26, %30 : vector<122x128xf32>
    %cst = arith.constant 0.000000e+00 : f32
    %32 = vector.broadcast %cst : f32 to vector<122x128xf32>
    %33 = arith.maximumf %31, %32 : vector<122x128xf32>
    %cst_13 = arith.constant dense<0.000000e+00> : vector<38x128xf32>
    %34 = tpu.matmul %2, %33, %cst_13 {dimension_numbers = #tpu.dot_dimension_numbers<[1], [0], [0], [1], [0, 0, 1, 1], [], []>} : vector<38x122xf32>, vector<122x128xf32>, vector<38x128xf32> -> vector<38x128xf32>
    %35 = vector.broadcast %3 : vector<38x1xf32> to vector<38x128xf32>
    %36 = arith.addf %34, %35 : vector<38x128xf32>
    %cst_14 = arith.constant 0.000000e+00 : f32
    %37 = vector.broadcast %cst_14 : f32 to vector<38x128xf32>
    %38 = arith.maximumf %36, %37 : vector<38x128xf32>
    %cst_15 = arith.constant dense<0.000000e+00> : vector<1x128xf32>
    %39 = tpu.matmul %4, %38, %cst_15 {dimension_numbers = #tpu.dot_dimension_numbers<[1], [0], [0], [1], [0, 0, 1, 1], [], []>} : vector<1x38xf32>, vector<38x128xf32>, vector<1x128xf32> -> vector<1x128xf32>
    %40 = vector.broadcast %5 : f32 to vector<1x128xf32>
    %41 = arith.addf %39, %40 : vector<1x128xf32>
    %c0_16 = arith.constant 0 : index
    %c0_17 = arith.constant 0 : index
    %42 = vector.load %arg8[%c0_16, %c0_17] : memref<1x128xf32, #tpu.memory_space<vmem>>, vector<1x128xf32>
    tpu.vector_store %arg8[%c0_16, %c0_17], %41 {strides = array<i32>} : memref<1x128xf32, #tpu.memory_space<vmem>>, vector<1x128xf32>,
    return
  }
  func.func @transform_0(%arg0: i32) -> (i32, i32) {
    %c0_i32 = arith.constant 0 : i32
    %c0_i32_0 = arith.constant 0 : i32
    return %c0_i32, %arg0 : i32, i32
  }
  func.func @transform_1(%arg0: i32) -> (i32, i32) {
    %c0_i32 = arith.constant 0 : i32
    %c0_i32_0 = arith.constant 0 : i32
    %c0_i32_1 = arith.constant 0 : i32
    return %c0_i32, %c0_i32_0 : i32, i32
  }
  func.func @transform_2(%arg0: i32) -> (i32, i32) {
    %c0_i32 = arith.constant 0 : i32
    %c0_i32_0 = arith.constant 0 : i32
    %c0_i32_1 = arith.constant 0 : i32
    return %c0_i32, %c0_i32_0 : i32, i32
  }
  func.func @transform_3(%arg0: i32) -> (i32, i32) {
    %c0_i32 = arith.constant 0 : i32
    %c0_i32_0 = arith.constant 0 : i32
    %c0_i32_1 = arith.constant 0 : i32
    return %c0_i32, %c0_i32_0 : i32, i32
  }
  func.func @transform_4(%arg0: i32) -> (i32, i32) {
    %c0_i32 = arith.constant 0 : i32
    %c0_i32_0 = arith.constant 0 : i32
    %c0_i32_1 = arith.constant 0 : i32
    return %c0_i32, %c0_i32_0 : i32, i32
  }
  func.func @transform_5(%arg0: i32) -> (i32, i32) {
    %c0_i32 = arith.constant 0 : i32
    %c0_i32_0 = arith.constant 0 : i32
    %c0_i32_1 = arith.constant 0 : i32
    return %c0_i32, %c0_i32_0 : i32, i32
  }
  func.func @transform_6(%arg0: i32) -> (i32, i32) {
    %c0_i32 = arith.constant 0 : i32
    %c0_i32_0 = arith.constant 0 : i32
    %c0_i32_1 = arith.constant 0 : i32
    return %c0_i32, %c0_i32_0 : i32, i32
  }
  func.func @transform_7(%arg0: i32) -> (i32, i32) {
    %c0_i32 = arith.constant 0 : i32
    %c0_i32_0 = arith.constant 0 : i32
    return %c0_i32, %arg0 : i32, i32
  }
}

</mosaic_0001>

<llo_original>
// kernel: mlp_forward.1
$region0: #{mlp_forward.1}
  #allocation0 [shape = 'u32[]', space=smem, size = 0x4, offset = 0x4, fixed_abs, tag = 'smem constant byte address 0x4 - core index']
  #allocation1 [shape = 'u32[144,128]{1,0:T(1,128)}', space=vmem, size = 0x12000, scoped, tag = 'internal scratch']
  #allocation2 [shape = 'f32[1,1]{1,0:T(1,128)S(6)}', space=smem, size = 0x200, scoped, tag = 'scoped memory for mlp_forward.1']
  %s0 = inlined_call_operand.vmem [shape: f32[4,8], index: 0, kind: input, shape index: {}]
  %s1 = inlined_call_operand.vmem [shape: f32[122,4], index: 1, kind: input, shape index: {}]
  %s2 = inlined_call_operand.vmem [shape: f32[122,1], index: 2, kind: input, shape index: {}]
  %s3 = inlined_call_operand.vmem [shape: f32[38,122], index: 3, kind: input, shape index: {}]
  %s4 = inlined_call_operand.vmem [shape: f32[38,1], index: 4, kind: input, shape index: {}]
  %s5 = inlined_call_operand.vmem [shape: f32[1,38], index: 5, kind: input, shape index: {}]
  %s6 = inlined_call_operand.<no memory space> [shape: f32[1,1], index: 6, kind: input, shape index: {}]
  %s7 = inlined_call_operand.hbm [shape: f32[1,8], index: 7, kind: output, shape index: {}]
  %s8 = sld [smem:[#allocation0]]
  $region38: #{mlp_forward.1} parent=0
    _
  %s10 = ssub.s32 1, %s8
  %s11 = scalar_select 0, %s10, %s8
  %12 = sst [smem:[#allocation2]] %s6
  $region1: #{mlp_forward.1} parent=0
    #allocation3 [shape = 'u8[512]{0}', space=vmem, size = 0x400, scoped, tag = 'output window, operand 0, single buffered']
    #allocation4 [shape = 's32[1]{0}', space=sflag, size = 0x4, scoped, tag = 'scoped memory for mlp_forward.1']
    %13 = vsyncpa [#allocation4], 0
    // Predicated region
    $region2: #{mlp_forward.1} parent=1 // pred_check
      _
    $region3: #{mlp_forward.1} parent=1 // pred_check_branch
      %15 = sbr.rel (0) target = $region5
    $region4: #{mlp_forward.1} parent=1 // pred_region
      _
    $region5: #{mlp_forward.1} parent=1 // pred_fallthru
      _
    // Predicated region
    $region6: #{mlp_forward.1} parent=1 // pred_check
      _
    $region7: #{mlp_forward.1} parent=1 // pred_check_branch
      %17 = sbr.rel (0) target = $region9
    $region8: #{mlp_forward.1} parent=1 // pred_region
      _
    $region9: #{mlp_forward.1} parent=1 // pred_fallthru
      _
    // Predicated region
    $region10: #{mlp_forward.1} parent=1 // pred_check
      _
    $region11: #{mlp_forward.1} parent=1 // pred_check_branch
      %19 = sbr.rel (0) target = $region13
    $region12: #{mlp_forward.1} parent=1 // pred_region
      _
    $region13: #{mlp_forward.1} parent=1 // pred_fallthru
      _
    // Predicated region
    $region14: #{mlp_forward.1} parent=1 // pred_check
      _
    $region15: #{mlp_forward.1} parent=1 // pred_check_branch
      %21 = sbr.rel (0) target = $region17
    $region16: #{mlp_forward.1} parent=1 // pred_region
      _
    $region17: #{mlp_forward.1} parent=1 // pred_fallthru
      _
    // Predicated region
    $region18: #{mlp_forward.1} parent=1 // pred_check
      _
    $region19: #{mlp_forward.1} parent=1 // pred_check_branch
      %23 = sbr.rel (0) target = $region21
    $region20: #{mlp_forward.1} parent=1 // pred_region
      _
    $region21: #{mlp_forward.1} parent=1 // pred_fallthru
      _
    // Predicated region
    $region22: #{mlp_forward.1} parent=1 // pred_check
      _
    $region23: #{mlp_forward.1} parent=1 // pred_check_branch
      %25 = sbr.rel (0) target = $region25
    $region24: #{mlp_forward.1} parent=1 // pred_region
      _
    $region25: #{mlp_forward.1} parent=1 // pred_fallthru
      _
    // Predicated region
    $region26: #{mlp_forward.1} parent=1 // pred_check
      _
    $region27: #{mlp_forward.1} parent=1 // pred_check_branch
      %27 = sbr.rel (0) target = $region29
    $region28: #{mlp_forward.1} parent=1 // pred_region
      _
    $region29: #{mlp_forward.1} parent=1 // pred_fallthru
      _
    %v28 = vld [vmem:[%s1] sm:$0xff]
    %v29 = vld [vmem:[%s1 + $0x8] sm:$0xff]
    %v30 = vld [vmem:[%s1 + $0x10] sm:$0xff]
    %v31 = vld [vmem:[%s1 + $0x18] sm:$0xff]
    %v32 = vld [vmem:[%s1 + $0x20] sm:$0xff]
    %v33 = vld [vmem:[%s1 + $0x28] sm:$0xff]
    %v34 = vld [vmem:[%s1 + $0x30] sm:$0xff]
    %v35 = vld [vmem:[%s1 + $0x38] sm:$0xff]
    %v36 = vld [vmem:[%s1 + $0x40] sm:$0xff]
    %v37 = vld [vmem:[%s1 + $0x48] sm:$0xff]
    %v38 = vld [vmem:[%s1 + $0x50] sm:$0xff]
    %v39 = vld [vmem:[%s1 + $0x58] sm:$0xff]
    %v40 = vld [vmem:[%s1 + $0x60] sm:$0xff]
    %v41 = vld [vmem:[%s1 + $0x68] sm:$0xff]
    %v42 = vld [vmem:[%s1 + $0x70] sm:$0xff]
    %v43 = vld [vmem:[%s1 + $0x78] sm:$0x3]
    %v44 = vld [vmem:[%s2] sm:$0xff]
    %v45 = vld [vmem:[%s2 + $0x8] sm:$0xff]
    %v46 = vld [vmem:[%s2 + $0x10] sm:$0xff]
    %v47 = vld [vmem:[%s2 + $0x18] sm:$0xff]
    %v48 = vld [vmem:[%s2 + $0x20] sm:$0xff]
    %v49 = vld [vmem:[%s2 + $0x28] sm:$0xff]
    %v50 = vld [vmem:[%s2 + $0x30] sm:$0xff]
    %v51 = vld [vmem:[%s2 + $0x38] sm:$0xff]
    %v52 = vld [vmem:[%s2 + $0x40] sm:$0xff]
    %v53 = vld [vmem:[%s2 + $0x48] sm:$0xff]
    %v54 = vld [vmem:[%s2 + $0x50] sm:$0xff]
    %v55 = vld [vmem:[%s2 + $0x58] sm:$0xff]
    %v56 = vld [vmem:[%s2 + $0x60] sm:$0xff]
    %v57 = vld [vmem:[%s2 + $0x68] sm:$0xff]
    %v58 = vld [vmem:[%s2 + $0x70] sm:$0xff]
    %v59 = vld [vmem:[%s2 + $0x78] sm:$0x3]
    %v60 = vld [vmem:[%s3] sm:$0xff]
    %v61 = vld [vmem:[%s3 + $0x8] sm:$0xff]
    %v62 = vld [vmem:[%s3 + $0x10] sm:$0xff]
    %v63 = vld [vmem:[%s3 + $0x18] sm:$0xff]
    %v64 = vld [vmem:[%s3 + $0x20] sm:$0x3f]
    %v65 = vld [vmem:[%s4] sm:$0xff]
    %v66 = vld [vmem:[%s4 + $0x8] sm:$0xff]
    %v67 = vld [vmem:[%s4 + $0x10] sm:$0xff]
    %v68 = vld [vmem:[%s4 + $0x18] sm:$0xff]
    %v69 = vld [vmem:[%s4 + $0x20] sm:$0x3f]
    %v70 = vld [vmem:[%s5] sm:$0x1]
    %s71 = sld [smem:[#allocation2]]
    %v72 = vld [vmem:[%s0] sm:$0xf]
    %74 = vset.pattern.permute.xlu0 0
    %75 = vperm.xlu0 %74, %v28
    %v76 = vpop.permute.xlu0 %75
    %79 = vset.pattern.permute.xlu0 0
    %80 = vperm.xlu0 %79, %v29
    %v81 = vpop.permute.xlu0 %80
    %84 = vset.pattern.permute.xlu0 0
    %85 = vperm.xlu0 %84, %v30
    %v86 = vpop.permute.xlu0 %85
    %89 = vset.pattern.permute.xlu0 0
    %90 = vperm.xlu0 %89, %v31
    %v91 = vpop.permute.xlu0 %90
    %94 = vset.pattern.permute.xlu0 0
    %95 = vperm.xlu0 %94, %v32
    %v96 = vpop.permute.xlu0 %95
    %99 = vset.pattern.permute.xlu0 0
    %100 = vperm.xlu0 %99, %v33
    %v101 = vpop.permute.xlu0 %100
    %104 = vset.pattern.permute.xlu0 0
    %105 = vperm.xlu0 %104, %v34
    %v106 = vpop.permute.xlu0 %105
    %109 = vset.pattern.permute.xlu0 0
    %110 = vperm.xlu0 %109, %v35
    %v111 = vpop.permute.xlu0 %110
    %114 = vset.pattern.permute.xlu0 0
    %115 = vperm.xlu0 %114, %v36
    %v116 = vpop.permute.xlu0 %115
    %119 = vset.pattern.permute.xlu0 0
    %120 = vperm.xlu0 %119, %v37
    %v121 = vpop.permute.xlu0 %120
    %124 = vset.pattern.permute.xlu0 0
    %125 = vperm.xlu0 %124, %v38
    %v126 = vpop.permute.xlu0 %125
    %129 = vset.pattern.permute.xlu0 0
    %130 = vperm.xlu0 %129, %v39
    %v131 = vpop.permute.xlu0 %130
    %134 = vset.pattern.permute.xlu0 0
    %135 = vperm.xlu0 %134, %v40
    %v136 = vpop.permute.xlu0 %135
    %139 = vset.pattern.permute.xlu0 0
    %140 = vperm.xlu0 %139, %v41
    %v141 = vpop.permute.xlu0 %140
    %144 = vset.pattern.permute.xlu0 0
    %145 = vperm.xlu0 %144, %v42
    %v146 = vpop.permute.xlu0 %145
    %149 = vset.pattern.permute.xlu0 0
    %150 = vperm.xlu0 %149, %v43
    %v151 = vpop.permute.xlu0 %150
    %v153 = vlaneseq
    %v154 = vshrl.u32 %v153, 7
    %v155 = vsub.s32 0, %v154
    %v156 = vrot.slane %v72, %v155
    %v157 = vmul.f32 %v76, %v156
    %v158 = vmul.f32 %v81, %v156
    %v159 = vmul.f32 %v86, %v156
    %v160 = vmul.f32 %v91, %v156
    %v161 = vmul.f32 %v96, %v156
    %v162 = vmul.f32 %v101, %v156
    %v163 = vmul.f32 %v106, %v156
    %v164 = vmul.f32 %v111, %v156
    %v165 = vmul.f32 %v116, %v156
    %v166 = vmul.f32 %v121, %v156
    %v167 = vmul.f32 %v126, %v156
    %v168 = vmul.f32 %v131, %v156
    %v169 = vmul.f32 %v136, %v156
    %v170 = vmul.f32 %v141, %v156
    %v171 = vmul.f32 %v146, %v156
    %v172 = vmul.f32 %v151, %v156
    %174 = vset.pattern.permute.xlu0 0
    %175 = vperm.xlu0 %174, %v44
    %v176 = vpop.permute.xlu0 %175
    %179 = vset.pattern.permute.xlu0 0
    %180 = vperm.xlu0 %179, %v45
    %v181 = vpop.permute.xlu0 %180
    %184 = vset.pattern.permute.xlu0 0
    %185 = vperm.xlu0 %184, %v46
    %v186 = vpop.permute.xlu0 %185
    %189 = vset.pattern.permute.xlu0 0
    %190 = vperm.xlu0 %189, %v47
    %v191 = vpop.permute.xlu0 %190
    %194 = vset.pattern.permute.xlu0 0
    %195 = vperm.xlu0 %194, %v48
    %v196 = vpop.permute.xlu0 %195
    %199 = vset.pattern.permute.xlu0 0
    %200 = vperm.xlu0 %199, %v49
    %v201 = vpop.permute.xlu0 %200
    %204 = vset.pattern.permute.xlu0 0
    %205 = vperm.xlu0 %204, %v50
    %v206 = vpop.permute.xlu0 %205
    %209 = vset.pattern.permute.xlu0 0
    %210 = vperm.xlu0 %209, %v51
    %v211 = vpop.permute.xlu0 %210
    %214 = vset.pattern.permute.xlu0 0
    %215 = vperm.xlu0 %214, %v52
    %v216 = vpop.permute.xlu0 %215
    %219 = vset.pattern.permute.xlu0 0
    %220 = vperm.xlu0 %219, %v53
    %v221 = vpop.permute.xlu0 %220
    %224 = vset.pattern.permute.xlu0 0
    %225 = vperm.xlu0 %224, %v54
    %v226 = vpop.permute.xlu0 %225
    %229 = vset.pattern.permute.xlu0 0
    %230 = vperm.xlu0 %229, %v55
    %v231 = vpop.permute.xlu0 %230
    %234 = vset.pattern.permute.xlu0 0
    %235 = vperm.xlu0 %234, %v56
    %v236 = vpop.permute.xlu0 %235
    %239 = vset.pattern.permute.xlu0 0
    %240 = vperm.xlu0 %239, %v57
    %v241 = vpop.permute.xlu0 %240
    %244 = vset.pattern.permute.xlu0 0
    %245 = vperm.xlu0 %244, %v58
    %v246 = vpop.permute.xlu0 %245
    %249 = vset.pattern.permute.xlu0 0
    %250 = vperm.xlu0 %249, %v59
    %v251 = vpop.permute.xlu0 %250
    %v253 = vadd.f32 %v176, %v157
    %v254 = vadd.f32 %v181, %v158
    %v255 = vadd.f32 %v186, %v159
    %v256 = vadd.f32 %v191, %v160
    %v257 = vadd.f32 %v196, %v161
    %v258 = vadd.f32 %v201, %v162
    %v259 = vadd.f32 %v206, %v163
    %v260 = vadd.f32 %v211, %v164
    %v261 = vadd.f32 %v216, %v165
    %v262 = vadd.f32 %v221, %v166
    %v263 = vadd.f32 %v226, %v167
    %v264 = vadd.f32 %v231, %v168
    %v265 = vadd.f32 %v236, %v169
    %v266 = vadd.f32 %v241, %v170
    %v267 = vadd.f32 %v246, %v171
    %v268 = vadd.f32 %v251, %v172
    %269 = vset.pattern.permute.xlu0 1
    %270 = vperm.xlu0 %269, %v28
    %v271 = vpop.permute.xlu0 %270
    %273 = vset.pattern.permute.xlu0 1
    %274 = vperm.xlu0 %273, %v29
    %v275 = vpop.permute.xlu0 %274
    %277 = vset.pattern.permute.xlu0 1
    %278 = vperm.xlu0 %277, %v30
    %v279 = vpop.permute.xlu0 %278
    %281 = vset.pattern.permute.xlu0 1
    %282 = vperm.xlu0 %281, %v31
    %v283 = vpop.permute.xlu0 %282
    %285 = vset.pattern.permute.xlu0 1
    %286 = vperm.xlu0 %285, %v32
    %v287 = vpop.permute.xlu0 %286
    %289 = vset.pattern.permute.xlu0 1
    %290 = vperm.xlu0 %289, %v33
    %v291 = vpop.permute.xlu0 %290
    %293 = vset.pattern.permute.xlu0 1
    %294 = vperm.xlu0 %293, %v34
    %v295 = vpop.permute.xlu0 %294
    %297 = vset.pattern.permute.xlu0 1
    %298 = vperm.xlu0 %297, %v35
    %v299 = vpop.permute.xlu0 %298
    %301 = vset.pattern.permute.xlu0 1
    %302 = vperm.xlu0 %301, %v36
    %v303 = vpop.permute.xlu0 %302
    %305 = vset.pattern.permute.xlu0 1
    %306 = vperm.xlu0 %305, %v37
    %v307 = vpop.permute.xlu0 %306
    %309 = vset.pattern.permute.xlu0 1
    %310 = vperm.xlu0 %309, %v38
    %v311 = vpop.permute.xlu0 %310
    %313 = vset.pattern.permute.xlu0 1
    %314 = vperm.xlu0 %313, %v39
    %v315 = vpop.permute.xlu0 %314
    %317 = vset.pattern.permute.xlu0 1
    %318 = vperm.xlu0 %317, %v40
    %v319 = vpop.permute.xlu0 %318
    %321 = vset.pattern.permute.xlu0 1
    %322 = vperm.xlu0 %321, %v41
    %v323 = vpop.permute.xlu0 %322
    %325 = vset.pattern.permute.xlu0 1
    %326 = vperm.xlu0 %325, %v42
    %v327 = vpop.permute.xlu0 %326
    %329 = vset.pattern.permute.xlu0 1
    %330 = vperm.xlu0 %329, %v43
    %v331 = vpop.permute.xlu0 %330
    %v333 = vlaneseq
    %v334 = vshrl.u32 %v333, 7
    %v335 = vsub.s32 1, %v334
    %v336 = vrot.slane %v72, %v335
    %v337 = vmul.f32 %v271, %v336
    %v338 = vmul.f32 %v275, %v336
    %v339 = vmul.f32 %v279, %v336
    %v340 = vmul.f32 %v283, %v336
    %v341 = vmul.f32 %v287, %v336
    %v342 = vmul.f32 %v291, %v336
    %v343 = vmul.f32 %v295, %v336
    %v344 = vmul.f32 %v299, %v336
    %v345 = vmul.f32 %v303, %v336
    %v346 = vmul.f32 %v307, %v336
    %v347 = vmul.f32 %v311, %v336
    %v348 = vmul.f32 %v315, %v336
    %v349 = vmul.f32 %v319, %v336
    %v350 = vmul.f32 %v323, %v336
    %v351 = vmul.f32 %v327, %v336
    %v352 = vmul.f32 %v331, %v336
    %v353 = vadd.f32 %v253, %v337
    %v354 = vadd.f32 %v254, %v338
    %v355 = vadd.f32 %v255, %v339
    %v356 = vadd.f32 %v256, %v340
    %v357 = vadd.f32 %v257, %v341
    %v358 = vadd.f32 %v258, %v342
    %v359 = vadd.f32 %v259, %v343
    %v360 = vadd.f32 %v260, %v344
    %v361 = vadd.f32 %v261, %v345
    %v362 = vadd.f32 %v262, %v346
    %v363 = vadd.f32 %v263, %v347
    %v364 = vadd.f32 %v264, %v348
    %v365 = vadd.f32 %v265, %v349
    %v366 = vadd.f32 %v266, %v350
    %v367 = vadd.f32 %v267, %v351
    %v368 = vadd.f32 %v268, %v352
    %369 = vset.pattern.permute.xlu0 2
    %370 = vperm.xlu0 %369, %v28
    %v371 = vpop.permute.xlu0 %370
    %373 = vset.pattern.permute.xlu0 2
    %374 = vperm.xlu0 %373, %v29
    %v375 = vpop.permute.xlu0 %374
    %377 = vset.pattern.permute.xlu0 2
    %378 = vperm.xlu0 %377, %v30
    %v379 = vpop.permute.xlu0 %378
    %381 = vset.pattern.permute.xlu0 2
    %382 = vperm.xlu0 %381, %v31
    %v383 = vpop.permute.xlu0 %382
    %385 = vset.pattern.permute.xlu0 2
    %386 = vperm.xlu0 %385, %v32
    %v387 = vpop.permute.xlu0 %386
    %389 = vset.pattern.permute.xlu0 2
    %390 = vperm.xlu0 %389, %v33
    %v391 = vpop.permute.xlu0 %390
    %393 = vset.pattern.permute.xlu0 2
    %394 = vperm.xlu0 %393, %v34
    %v395 = vpop.permute.xlu0 %394
    %397 = vset.pattern.permute.xlu0 2
    %398 = vperm.xlu0 %397, %v35
    %v399 = vpop.permute.xlu0 %398
    %401 = vset.pattern.permute.xlu0 2
    %402 = vperm.xlu0 %401, %v36
    %v403 = vpop.permute.xlu0 %402
    %405 = vset.pattern.permute.xlu0 2
    %406 = vperm.xlu0 %405, %v37
    %v407 = vpop.permute.xlu0 %406
    %409 = vset.pattern.permute.xlu0 2
    %410 = vperm.xlu0 %409, %v38
    %v411 = vpop.permute.xlu0 %410
    %413 = vset.pattern.permute.xlu0 2
    %414 = vperm.xlu0 %413, %v39
    %v415 = vpop.permute.xlu0 %414
    %417 = vset.pattern.permute.xlu0 2
    %418 = vperm.xlu0 %417, %v40
    %v419 = vpop.permute.xlu0 %418
    %421 = vset.pattern.permute.xlu0 2
    %422 = vperm.xlu0 %421, %v41
    %v423 = vpop.permute.xlu0 %422
    %425 = vset.pattern.permute.xlu0 2
    %426 = vperm.xlu0 %425, %v42
    %v427 = vpop.permute.xlu0 %426
    %429 = vset.pattern.permute.xlu0 2
    %430 = vperm.xlu0 %429, %v43
    %v431 = vpop.permute.xlu0 %430
    %v433 = vlaneseq
    %v434 = vshrl.u32 %v433, 7
    %v435 = vsub.s32 2, %v434
    %v436 = vrot.slane %v72, %v435
    %v437 = vmul.f32 %v371, %v436
    %v438 = vmul.f32 %v375, %v436
    %v439 = vmul.f32 %v379, %v436
    %v440 = vmul.f32 %v383, %v436
    %v441 = vmul.f32 %v387, %v436
    %v442 = vmul.f32 %v391, %v436
    %v443 = vmul.f32 %v395, %v436
    %v444 = vmul.f32 %v399, %v436
    %v445 = vmul.f32 %v403, %v436
    %v446 = vmul.f32 %v407, %v436
    %v447 = vmul.f32 %v411, %v436
    %v448 = vmul.f32 %v415, %v436
    %v449 = vmul.f32 %v419, %v436
    %v450 = vmul.f32 %v423, %v436
    %v451 = vmul.f32 %v427, %v436
    %v452 = vmul.f32 %v431, %v436
    %v453 = vadd.f32 %v353, %v437
    %v454 = vadd.f32 %v354, %v438
    %v455 = vadd.f32 %v355, %v439
    %v456 = vadd.f32 %v356, %v440
    %v457 = vadd.f32 %v357, %v441
    %v458 = vadd.f32 %v358, %v442
    %v459 = vadd.f32 %v359, %v443
    %v460 = vadd.f32 %v360, %v444
    %v461 = vadd.f32 %v361, %v445
    %v462 = vadd.f32 %v362, %v446
    %v463 = vadd.f32 %v363, %v447
    %v464 = vadd.f32 %v364, %v448
    %v465 = vadd.f32 %v365, %v449
    %v466 = vadd.f32 %v366, %v450
    %v467 = vadd.f32 %v367, %v451
    %v468 = vadd.f32 %v368, %v452
    %469 = vset.pattern.permute.xlu0 3
    %470 = vperm.xlu0 %469, %v28
    %v471 = vpop.permute.xlu0 %470
    %473 = vset.pattern.permute.xlu0 3
    %474 = vperm.xlu0 %473, %v29
    %v475 = vpop.permute.xlu0 %474
    %477 = vset.pattern.permute.xlu0 3
    %478 = vperm.xlu0 %477, %v30
    %v479 = vpop.permute.xlu0 %478
    %481 = vset.pattern.permute.xlu0 3
    %482 = vperm.xlu0 %481, %v31
    %v483 = vpop.permute.xlu0 %482
    %485 = vset.pattern.permute.xlu0 3
    %486 = vperm.xlu0 %485, %v32
    %v487 = vpop.permute.xlu0 %486
    %489 = vset.pattern.permute.xlu0 3
    %490 = vperm.xlu0 %489, %v33
    %v491 = vpop.permute.xlu0 %490
    %493 = vset.pattern.permute.xlu0 3
    %494 = vperm.xlu0 %493, %v34
    %v495 = vpop.permute.xlu0 %494
    %497 = vset.pattern.permute.xlu0 3
    %498 = vperm.xlu0 %497, %v35
    %v499 = vpop.permute.xlu0 %498
    %501 = vset.pattern.permute.xlu0 3
    %502 = vperm.xlu0 %501, %v36
    %v503 = vpop.permute.xlu0 %502
    %505 = vset.pattern.permute.xlu0 3
    %506 = vperm.xlu0 %505, %v37
    %v507 = vpop.permute.xlu0 %506
    %509 = vset.pattern.permute.xlu0 3
    %510 = vperm.xlu0 %509, %v38
    %v511 = vpop.permute.xlu0 %510
    %513 = vset.pattern.permute.xlu0 3
    %514 = vperm.xlu0 %513, %v39
    %v515 = vpop.permute.xlu0 %514
    %517 = vset.pattern.permute.xlu0 3
    %518 = vperm.xlu0 %517, %v40
    %v519 = vpop.permute.xlu0 %518
    %521 = vset.pattern.permute.xlu0 3
    %522 = vperm.xlu0 %521, %v41
    %v523 = vpop.permute.xlu0 %522
    %525 = vset.pattern.permute.xlu0 3
    %526 = vperm.xlu0 %525, %v42
    %v527 = vpop.permute.xlu0 %526
    %529 = vset.pattern.permute.xlu0 3
    %530 = vperm.xlu0 %529, %v43
    %v531 = vpop.permute.xlu0 %530
    %v533 = vlaneseq
    %v534 = vshrl.u32 %v533, 7
    %v535 = vsub.s32 3, %v534
    %v536 = vrot.slane %v72, %v535
    %v537 = vmul.f32 %v471, %v536
    %v538 = vmul.f32 %v475, %v536
    %v539 = vmul.f32 %v479, %v536
    %v540 = vmul.f32 %v483, %v536
    %v541 = vmul.f32 %v487, %v536
    %v542 = vmul.f32 %v491, %v536
    %v543 = vmul.f32 %v495, %v536
    %v544 = vmul.f32 %v499, %v536
    %v545 = vmul.f32 %v503, %v536
    %v546 = vmul.f32 %v507, %v536
    %v547 = vmul.f32 %v511, %v536
    %v548 = vmul.f32 %v515, %v536
    %v549 = vmul.f32 %v519, %v536
    %v550 = vmul.f32 %v523, %v536
    %v551 = vmul.f32 %v527, %v536
    %v552 = vmul.f32 %v531, %v536
    %v553 = vadd.f32 %v453, %v537
    %v554 = vadd.f32 %v454, %v538
    %v555 = vadd.f32 %v455, %v539
    %v556 = vadd.f32 %v456, %v540
    %v557 = vadd.f32 %v457, %v541
    %v558 = vadd.f32 %v458, %v542
    %v559 = vadd.f32 %v459, %v543
    %v560 = vadd.f32 %v460, %v544
    %v561 = vadd.f32 %v461, %v545
    %v562 = vadd.f32 %v462, %v546
    %v563 = vadd.f32 %v463, %v547
    %v564 = vadd.f32 %v464, %v548
    %v565 = vadd.f32 %v465, %v549
    %v566 = vadd.f32 %v466, %v550
    %v567 = vadd.f32 %v467, %v551
    %v568 = vadd.f32 %v468, %v552
    %v569 = vmax.f32 %v553, 0.0
    %v570 = vmax.f32 %v554, 0.0
    %v571 = vmax.f32 %v555, 0.0
    %v572 = vmax.f32 %v556, 0.0
    %v573 = vmax.f32 %v557, 0.0
    %v574 = vmax.f32 %v558, 0.0
    %v575 = vmax.f32 %v559, 0.0
    %v576 = vmax.f32 %v560, 0.0
    %v577 = vmax.f32 %v561, 0.0
    %v578 = vmax.f32 %v562, 0.0
    %v579 = vmax.f32 %v563, 0.0
    %v580 = vmax.f32 %v564, 0.0
    %v581 = vmax.f32 %v565, 0.0
    %v582 = vmax.f32 %v566, 0.0
    %v583 = vmax.f32 %v567, 0.0
    %v584 = vmax.f32 %v568, 0.0
    %586 = vset.pattern.permute.xlu0 0
    %587 = vperm.xlu0 %586, %v65
    %v588 = vpop.permute.xlu0 %587
    %591 = vset.pattern.permute.xlu0 0
    %592 = vperm.xlu0 %591, %v66
    %v593 = vpop.permute.xlu0 %592
    %596 = vset.pattern.permute.xlu0 0
    %597 = vperm.xlu0 %596, %v67
    %v598 = vpop.permute.xlu0 %597
    %601 = vset.pattern.permute.xlu0 0
    %602 = vperm.xlu0 %601, %v68
    %v603 = vpop.permute.xlu0 %602
    %606 = vset.pattern.permute.xlu0 0
    %607 = vperm.xlu0 %606, %v69
    %v608 = vpop.permute.xlu0 %607
    %vm610 = vcmask 998400
    %v612 = vsel %vm610, %v60, 0
    %v615 = vsel %vm610, %v61, 0
    %v618 = vsel %vm610, %v62, 0
    %v621 = vsel %vm610, %v63, 0
    %v624 = vsel %vm610, %v64, 0
    %vm626 = vcmask 1041408
    %v628 = vsel %vm626, %v584, 0
    %630 = vmatprep.subr.mxu0 0.0
    %631 = vmatpush1.msra.mxu0 %v628
    %632 = vmatprep.subr.mxu0 0.0
    %633 = vmatpush1.msra.mxu0 %v583
    %634 = vmatprep.subr.mxu0 0.0
    %635 = vmatpush1.msra.mxu0 %v582
    %636 = vmatprep.subr.mxu0 0.0
    %637 = vmatpush1.msra.mxu0 %v581
    %638 = vmatprep.subr.mxu0 0.0
    %639 = vmatpush1.msra.mxu0 %v580
    %640 = vmatprep.subr.mxu0 0.0
    %641 = vmatpush1.msra.mxu0 %v579
    %642 = vmatprep.subr.mxu0 0.0
    %643 = vmatpush1.msra.mxu0 %v578
    %644 = vmatprep.subr.mxu0 0.0
    %645 = vmatpush1.msra.mxu0 %v577
    %646 = vmatprep.subr.mxu0 0.0
    %647 = vmatpush1.msra.mxu0 %v576
    %648 = vmatprep.subr.mxu0 0.0
    %649 = vmatpush1.msra.mxu0 %v575
    %650 = vmatprep.subr.mxu0 0.0
    %651 = vmatpush1.msra.mxu0 %v574
    %652 = vmatprep.subr.mxu0 0.0
    %653 = vmatpush1.msra.mxu0 %v573
    %654 = vmatprep.subr.mxu0 0.0
    %655 = vmatpush1.msra.mxu0 %v572
    %656 = vmatprep.subr.mxu0 0.0
    %657 = vmatpush1.msra.mxu0 %v571
    %658 = vmatprep.subr.mxu0 0.0
    %659 = vmatpush1.msra.mxu0 %v570
    %660 = vmatprep.subr.mxu0 0.0
    %661 = vmatpush1.msra.mxu0 %v569
    %662 = vmatprep.subr.mxu0 0.0
    %663 = vmatpush2.msra.mxu0 0.0
    %664 = vmatprep.subr.mxu0 0.0
    %665 = vmatpush2.msra.mxu0 0.0
    %666 = vmatprep.subr.mxu0 0.0
    %667 = vmatpush2.msra.mxu0 0.0
    %668 = vmatprep.subr.mxu0 0.0
    %669 = vmatpush2.msra.mxu0 0.0
    %670 = vmatprep.subr.mxu0 0.0
    %671 = vmatpush2.msra.mxu0 0.0
    %672 = vmatprep.subr.mxu0 0.0
    %673 = vmatpush2.msra.mxu0 0.0
    %674 = vmatprep.subr.mxu0 0.0
    %675 = vmatpush2.msra.mxu0 0.0
    %676 = vmatprep.subr.mxu0 0.0
    %677 = vmatpush2.msra.mxu0 0.0
    %678 = vmatprep.subr.mxu0 0.0
    %679 = vmatpush2.msra.mxu0 0.0
    %680 = vmatprep.subr.mxu0 0.0
    %681 = vmatpush2.msra.mxu0 0.0
    %682 = vmatprep.subr.mxu0 0.0
    %683 = vmatpush2.msra.mxu0 0.0
    %684 = vmatprep.subr.mxu0 0.0
    %685 = vmatpush2.msra.mxu0 0.0
    %686 = vmatprep.subr.mxu0 0.0
    %687 = vmatpush2.msra.mxu0 0.0
    %688 = vmatprep.subr.mxu0 0.0
    %689 = vmatpush2.msra.mxu0 0.0
    %690 = vmatprep.subr.mxu0 0.0
    %691 = vmatpush2.msra.mxu0 0.0
    %692 = vmatprep.subr.mxu0 0.0
    %693 = vmatpush2.msra.mxu0 0.0
    %694 = vmatprep.mubr.f32.mxu0 0.0
    %695 = vmatmul.mubr.f32.gmra.mxu0 %v612
    %v696 = vpop.f32.mrf.mxu0
    %v697 = vadd.f32 %v588, %v696
    %v698 = vpop.f32.mrf.mxu0
    %699 = vmatprep.mubr.f32.mxu0 0.0
    %700 = vmatmul.mubr.f32.gmra.mxu0 %v615
    %v701 = vpop.f32.mrf.mxu0
    %v702 = vadd.f32 %v593, %v701
    %v703 = vpop.f32.mrf.mxu0
    %704 = vmatprep.mubr.f32.mxu0 0.0
    %705 = vmatmul.mubr.f32.gmra.mxu0 %v618
    %v706 = vpop.f32.mrf.mxu0
    %v707 = vadd.f32 %v598, %v706
    %v708 = vpop.f32.mrf.mxu0
    %709 = vmatprep.mubr.f32.mxu0 0.0
    %710 = vmatmul.mubr.f32.gmra.mxu0 %v621
    %v711 = vpop.f32.mrf.mxu0
    %v712 = vadd.f32 %v603, %v711
    %v713 = vpop.f32.mrf.mxu0
    %714 = vmatprep.mubr.f32.mxu0 0.0
    %715 = vmatmul.mubr.f32.gmra.mxu0 %v624
    %v716 = vpop.f32.mrf.mxu0
    %v717 = vadd.f32 %v608, %v716
    %v718 = vpop.f32.mrf.mxu0
    %719 = vdwg.mxu0
    %v720 = vmax.f32 %v697, 0.0
    %v721 = vmax.f32 %v702, 0.0
    %v722 = vmax.f32 %v707, 0.0
    %v723 = vmax.f32 %v712, 0.0
    %v724 = vmax.f32 %v717, 0.0
    %v725 = vstv %s71
    %vm726 = vcmask 310272
    %v728 = vsel %vm726, %v70, 0
    %vm730 = vcmask 1045504
    %v732 = vsel %vm730, %v724, 0
    %734 = vmatprep.subr.mxu0 0.0
    %735 = vmatpush1.msra.mxu0 0.0
    %736 = vmatprep.subr.mxu0 0.0
    %737 = vmatpush1.msra.mxu0 0.0
    %738 = vmatprep.subr.mxu0 0.0
    %739 = vmatpush1.msra.mxu0 0.0
    %740 = vmatprep.subr.mxu0 0.0
    %741 = vmatpush1.msra.mxu0 0.0
    %742 = vmatprep.subr.mxu0 0.0
    %743 = vmatpush1.msra.mxu0 0.0
    %744 = vmatprep.subr.mxu0 0.0
    %745 = vmatpush1.msra.mxu0 0.0
    %746 = vmatprep.subr.mxu0 0.0
    %747 = vmatpush1.msra.mxu0 0.0
    %748 = vmatprep.subr.mxu0 0.0
    %749 = vmatpush1.msra.mxu0 0.0
    %750 = vmatprep.subr.mxu0 0.0
    %751 = vmatpush1.msra.mxu0 0.0
    %752 = vmatprep.subr.mxu0 0.0
    %753 = vmatpush1.msra.mxu0 0.0
    %754 = vmatprep.subr.mxu0 0.0
    %755 = vmatpush1.msra.mxu0 0.0
    %756 = vmatprep.subr.mxu0 0.0
    %757 = vmatpush1.msra.mxu0 %v732
    %758 = vmatprep.subr.mxu0 0.0
    %759 = vmatpush1.msra.mxu0 %v723
    %760 = vmatprep.subr.mxu0 0.0
    %761 = vmatpush1.msra.mxu0 %v722
    %762 = vmatprep.subr.mxu0 0.0
    %763 = vmatpush1.msra.mxu0 %v721
    %764 = vmatprep.subr.mxu0 0.0
    %765 = vmatpush1.msra.mxu0 %v720
    %766 = vmatprep.subr.mxu0 0.0
    %767 = vmatpush2.msra.mxu0 0.0
    %768 = vmatprep.subr.mxu0 0.0
    %769 = vmatpush2.msra.mxu0 0.0
    %770 = vmatprep.subr.mxu0 0.0
    %771 = vmatpush2.msra.mxu0 0.0
    %772 = vmatprep.subr.mxu0 0.0
    %773 = vmatpush2.msra.mxu0 0.0
    %774 = vmatprep.subr.mxu0 0.0
    %775 = vmatpush2.msra.mxu0 0.0
    %776 = vmatprep.subr.mxu0 0.0
    %777 = vmatpush2.msra.mxu0 0.0
    %778 = vmatprep.subr.mxu0 0.0
    %779 = vmatpush2.msra.mxu0 0.0
    %780 = vmatprep.subr.mxu0 0.0
    %781 = vmatpush2.msra.mxu0 0.0
    %782 = vmatprep.subr.mxu0 0.0
    %783 = vmatpush2.msra.mxu0 0.0
    %784 = vmatprep.subr.mxu0 0.0
    %785 = vmatpush2.msra.mxu0 0.0
    %786 = vmatprep.subr.mxu0 0.0
    %787 = vmatpush2.msra.mxu0 0.0
    %788 = vmatprep.subr.mxu0 0.0
    %789 = vmatpush2.msra.mxu0 0.0
    %790 = vmatprep.subr.mxu0 0.0
    %791 = vmatpush2.msra.mxu0 0.0
    %792 = vmatprep.subr.mxu0 0.0
    %793 = vmatpush2.msra.mxu0 0.0
    %794 = vmatprep.subr.mxu0 0.0
    %795 = vmatpush2.msra.mxu0 0.0
    %796 = vmatprep.subr.mxu0 0.0
    %797 = vmatpush2.msra.mxu0 0.0
    %798 = vmatprep.mubr.f32.mxu0 0.0
    %799 = vmatmul.mubr.f32.gmra.mxu0 %v728
    %v800 = vpop.f32.mrf.mxu0
    %v801 = vadd.f32 %v725, %v800
    %v802 = vpop.f32.mrf.mxu0
    %803 = vdwg.mxu0
    %804 = vst [vmem:[#allocation3] sm:$0x1] %v801
    // Predicated region
    $region30: #{mlp_forward.1} parent=1 // pred_check
      _
    $region31: #{mlp_forward.1} parent=1 // pred_check_branch
      %806 = sbr.rel (0) target = $region33
    $region32: #{mlp_forward.1} parent=1 // pred_region
      %s808 = ssub.s32 16, 16
      %809 = vsyncadd [#allocation4], %s808
      %s811 = sshll.u32 [#allocation3], 4
      %s812 = int_to_ptr.vmem [resolvable:$true] %s811
      %814 = dma.vmem_to_hbm [thread:$0]  %s812, 16, %s7, [#allocation4]
    $region33: #{mlp_forward.1} parent=1 // pred_fallthru
      _
    // Predicated region
    $region34: #{mlp_forward.1} parent=1 // pred_check
      _
    $region35: #{mlp_forward.1} parent=1 // pred_check_branch
      %816 = sbr.rel (0) target = $region37
    $region36: #{mlp_forward.1} parent=1 // pred_region
      %817 = dma.done [#allocation4], 16
    $region37: #{mlp_forward.1} parent=1 // pred_fallthru
      _
    %818 = vsyncpa [#allocation4], 1

</llo_original>
